<compile_context>
chip_gen: v5e
topology: v5e:2x2
jax: 0.10.0
libtpu: 0.0.40
codegen_flags: <defaults>
</compile_context>

<pallas_src>
import functools
import math

import jax
import jax.numpy as jnp
from jax.experimental import pallas as pl
from jax.experimental.pallas import tpu as pltpu


def _round_up(x: int, m: int) -> int:
    return ((x + m - 1) // m) * m


def _rff_kernel(x_ref, bt_ref, out_ref, *, rff_num: int):
    # x_ref  : (tm, input_num)        VMEM tile of the input batch
    # bt_ref : (input_num, rff_num)   full B^T (resident across the grid)
    # out_ref: (tm, 2*rff_num)        cos in [:rff_num], sin in [rff_num:]
    bv = (2.0 * math.pi) * jnp.dot(
        x_ref[...], bt_ref[...], preferred_element_type=jnp.float32
    )
    # Direct half-writes (static slices) -- no concatenate temporary.
    out_ref[:, :rff_num] = jnp.cos(bv).astype(out_ref.dtype)
    out_ref[:, rff_num:] = jnp.sin(bv).astype(out_ref.dtype)


def rff_forward(x, B, *, tm=256, vmem_budget_bytes=24 * 1024 * 1024):
    """Random Fourier Features forward.

    x: (batch, input_num) f32
    B: (rff_num, input_num) f32
    returns: (batch, 2*rff_num) f32  == concat([cos(2*pi*x@B.T), sin(2*pi*x@B.T)], 1)
    """
    batch, input_num = x.shape
    rff_num, in2 = B.shape
    assert in2 == input_num, "B must be (rff_num, input_num)"

    # Layout glue done once in plain JAX; cache this if B is a fixed parameter.
    bt = B.T  # (input_num, rff_num)

    # --- Pick the batch tile -------------------------------------------------
    # Keep tm a multiple of 8 (f32 sublane) and no larger than the padded batch.
    padded_batch8 = _round_up(batch, 8)
    tm = max(8, min((tm // 8) * 8, padded_batch8))

    # VMEM budget: 2x (x tile) + 2x (B^T, double-buffered even though it never
    # re-DMAs) + 2x (out tile), all f32.  Shrink tm until it fits.
    def _vmem_bytes(tm_):
        return 4 * (2 * tm_ * input_num
                    + 2 * input_num * rff_num
                    + 2 * tm_ * 2 * rff_num)

    while tm > 8 and _vmem_bytes(tm) > vmem_budget_bytes:
        tm = max(8, ((tm // 2) // 8) * 8)

    # --- Pad batch to a multiple of tm (removed `batch % tm == 0` restriction)
    padded_batch = _round_up(batch, tm)
    if padded_batch != batch:
        x = jnp.pad(x, ((0, padded_batch - batch), (0, 0)))

    grid = (padded_batch // tm,)

    cost = pl.CostEstimate(
        flops=2 * padded_batch * rff_num * input_num + padded_batch * rff_num,
        transcendentals=2 * padded_batch * rff_num,  # cos + sin per element (EUP-bound)
        bytes_accessed=4 * (padded_batch * input_num
                            + input_num * rff_num
                            + padded_batch * 2 * rff_num),
    )

    out = pl.pallas_call(
        functools.partial(_rff_kernel, rff_num=rff_num),
        out_shape=jax.ShapeDtypeStruct((padded_batch, 2 * rff_num), jnp.float32),
        grid_spec=pltpu.PrefetchScalarGridSpec(
            num_scalar_prefetch=0,
            grid=grid,
            in_specs=[
                pl.BlockSpec((tm, input_num), lambda i: (i, 0)),
                # Constant index_map: B^T is DMA'd once and stays resident.
                pl.BlockSpec((input_num, rff_num), lambda i: (0, 0)),
            ],
            out_specs=pl.BlockSpec((tm, 2 * rff_num), lambda i: (i, 0)),
        ),
        compiler_params=pltpu.CompilerParams(
            dimension_semantics=("parallel",),
        ),
        cost_estimate=cost,
    )(x, bt)

    if padded_batch != batch:
        out = out[:batch]
    return out


def rff_reference(x, B):
    bv = 2.0 * math.pi * (x @ B.T)
    return jnp.concatenate([jnp.cos(bv), jnp.sin(bv)], axis=1)


if __name__ == "__main__":
    # Small, module-consistent shapes.
    batch, input_num, rff_num = 8, 32, 64
    u, std = 0.0, 1.0

    key = jax.random.PRNGKey(0)
    kx, kb = jax.random.split(key)

    # Deterministic synthetic parameter init (torch.randn(rff_num, input_num)*std + u)
    B = jax.random.normal(kb, (rff_num, input_num), dtype=jnp.float32) * std + u
    x = jax.random.normal(kx, (batch, input_num), dtype=jnp.float32)

    out = rff_forward(x, B)
    out = jax.block_until_ready(out)

    ref = rff_reference(x, B)
    assert out.shape == (batch, 2 * rff_num)
    assert jnp.allclose(out, ref, atol=1e-4, rtol=1e-5), "mismatch vs reference"

    print("KERNEL_OK")
</pallas_src>

<mosaic_0001>
module attributes {stable_mosaic.version = 11 : i64} {
  func.func @_rff_kernel(%arg0: i32, %arg1: memref<8x32xf32, #tpu.memory_space<vmem>>, %arg2: memref<32x64xf32, #tpu.memory_space<vmem>>, %arg3: memref<8x128xf32, #tpu.memory_space<vmem>>) attributes {dimension_semantics = [#tpu.dimension_semantics<parallel>], iteration_bounds = array<i64: 1>, scalar_prefetch = 0 : i64, scratch_operands = 0 : i64, tpu.core_type = #tpu.core_type<tc>, window_params = [{transform_indices = @transform_0, window_bounds = array<i64: 8, 32>}, {pipeline_mode = #tpu.pipeline_mode<synchronous>, transform_indices = @transform_1, window_bounds = array<i64: 32, 64>}, {transform_indices = @transform_2, window_bounds = array<i64: 8, 128>}]} {
    %c0 = arith.constant 0 : index
    %c0_0 = arith.constant 0 : index
    %0 = vector.load %arg1[%c0, %c0_0] : memref<8x32xf32, #tpu.memory_space<vmem>>, vector<8x32xf32>
    %c0_1 = arith.constant 0 : index
    %c0_2 = arith.constant 0 : index
    %1 = vector.load %arg2[%c0_1, %c0_2] : memref<32x64xf32, #tpu.memory_space<vmem>>, vector<32x64xf32>
    %cst = arith.constant dense<0.000000e+00> : vector<8x64xf32>
    %2 = tpu.matmul %0, %1, %cst {dimension_numbers = #tpu.dot_dimension_numbers<[1], [0], [0], [1], [0, 0, 1, 1], [], []>} : vector<8x32xf32>, vector<32x64xf32>, vector<8x64xf32> -> vector<8x64xf32>
    %cst_3 = arith.constant 6.28318548 : f32
    %3 = vector.broadcast %cst_3 : f32 to vector<8x64xf32>
    %4 = arith.mulf %3, %2 : vector<8x64xf32>
    %5 = math.cos %4 : vector<8x64xf32>
    %c0_4 = arith.constant 0 : index
    %c0_5 = arith.constant 0 : index
    %6 = vector.load %arg3[%c0_4, %c0_5] : memref<8x128xf32, #tpu.memory_space<vmem>>, vector<8x64xf32>
    tpu.vector_store %arg3[%c0_4, %c0_5], %5 {strides = array<i32>} : memref<8x128xf32, #tpu.memory_space<vmem>>, vector<8x64xf32>,
    %7 = math.sin %4 : vector<8x64xf32>
    %c0_6 = arith.constant 0 : index
    %c64 = arith.constant 64 : index
    %8 = vector.load %arg3[%c0_6, %c64] : memref<8x128xf32, #tpu.memory_space<vmem>>, vector<8x64xf32>
    tpu.vector_store %arg3[%c0_6, %c64], %7 {strides = array<i32>} : memref<8x128xf32, #tpu.memory_space<vmem>>, vector<8x64xf32>,
    return
  }
  func.func @transform_0(%arg0: i32) -> (i32, i32) {
    %c0_i32 = arith.constant 0 : i32
    %c0_i32_0 = arith.constant 0 : i32
    return %arg0, %c0_i32 : i32, i32
  }
  func.func @transform_1(%arg0: i32) -> (i32, i32) {
    %c0_i32 = arith.constant 0 : i32
    %c0_i32_0 = arith.constant 0 : i32
    %c0_i32_1 = arith.constant 0 : i32
    return %c0_i32, %c0_i32_0 : i32, i32
  }
  func.func @transform_2(%arg0: i32) -> (i32, i32) {
    %c0_i32 = arith.constant 0 : i32
    %c0_i32_0 = arith.constant 0 : i32
    return %arg0, %c0_i32 : i32, i32
  }
}

</mosaic_0001>

<llo_original>
// kernel: tpu_custom_call.1
$region0: #{tpu_custom_call.1}
  #allocation0 [shape = 'u32[]', space=smem, size = 0x4, offset = 0x4, fixed_abs, tag = 'smem constant byte address 0x4 - core index']
  #allocation1 [shape = 'u32[72,128]{1,0:T(1,128)}', space=vmem, size = 0x9000, scoped, tag = 'internal scratch']
  %s0 = inlined_call_operand.hbm [shape: f32[8,32], index: 0, kind: input, shape index: {}]
  %s1 = inlined_call_operand.hbm [shape: f32[32,64], index: 1, kind: input, shape index: {}]
  %s2 = inlined_call_operand.hbm [shape: f32[8,128], index: 2, kind: output, shape index: {}]
  %s3 = sld [smem:[#allocation0]]
  $region26: #{tpu_custom_call.1} parent=0
    _
  %s5 = ssub.s32 1, %s3
  %s6 = scalar_select 0, %s5, %s3
  $region1: #{tpu_custom_call.1} parent=0
    #allocation2 [shape = 'u8[4096]{0}', space=vmem, size = 0x1000, scoped, tag = 'input window, operand 0, single buffered']
    #allocation3 [shape = 's32[1]{0}', space=sflag, size = 0x4, scoped, tag = 'scoped memory for tpu_custom_call.1']
    #allocation4 [shape = 's32[1]{0}', space=sflag, size = 0x4, scoped, tag = 'scoped memory for tpu_custom_call.1']
    #allocation5 [shape = 'u8[16384]{0}', space=vmem, size = 0x4000, scoped, tag = 'input window, operand 1, single buffered']
    #allocation6 [shape = 's32[1]{0}', space=sflag, size = 0x4, scoped, tag = 'scoped memory for tpu_custom_call.1']
    #allocation7 [shape = 'u8[4096]{0}', space=vmem, size = 0x1000, scoped, tag = 'output window, operand 0, single buffered']
    %7 = vsyncpa [#allocation3], 0
    %8 = vsyncpa [#allocation6], 0
    %9 = vsyncpa [#allocation4], 0
    // Predicated region
    $region2: #{tpu_custom_call.1} parent=1 // pred_check
      _
    $region3: #{tpu_custom_call.1} parent=1 // pred_check_branch
      %11 = sbr.rel (0) target = $region5
    $region4: #{tpu_custom_call.1} parent=1 // pred_region
      %13 = vsyncadd [#allocation3], 0
      %s15 = sshll.u32 %s0, 4
      %s16 = int_to_ptr.hbm [resolvable:$true] %s15
      %s17 = sshll.u32 [#allocation2], 4
      %s18 = int_to_ptr.vmem [resolvable:$true] %s17
      %20 = dma.hbm_to_vmem [thread:$0]  %s16, 128, %s18, [#allocation3]
    $region5: #{tpu_custom_call.1} parent=1 // pred_fallthru
      _
    // Predicated region
    $region6: #{tpu_custom_call.1} parent=1 // pred_check
      _
    $region7: #{tpu_custom_call.1} parent=1 // pred_check_branch
      %22 = sbr.rel (0) target = $region9
    $region8: #{tpu_custom_call.1} parent=1 // pred_region
      %24 = vsyncadd [#allocation6], 0
      %s25 = sshll.u32 %s1, 4
      %s26 = int_to_ptr.hbm [resolvable:$true] %s25
      %s27 = sshll.u32 [#allocation5], 4
      %s28 = int_to_ptr.vmem [resolvable:$true] %s27
      %33 = dma.hbm_to_vmem [thread:$0]  %s26, 512, %s28, [#allocation6], 128, 128, 8
    $region9: #{tpu_custom_call.1} parent=1 // pred_fallthru
      _
    // Predicated region
    $region10: #{tpu_custom_call.1} parent=1 // pred_check
      _
    $region11: #{tpu_custom_call.1} parent=1 // pred_check_branch
      %35 = sbr.rel (0) target = $region13
    $region12: #{tpu_custom_call.1} parent=1 // pred_region
      %37 = dma.done [#allocation3], 128
    $region13: #{tpu_custom_call.1} parent=1 // pred_fallthru
      _
    // Predicated region
    $region14: #{tpu_custom_call.1} parent=1 // pred_check
      _
    $region15: #{tpu_custom_call.1} parent=1 // pred_check_branch
      %39 = sbr.rel (0) target = $region17
    $region16: #{tpu_custom_call.1} parent=1 // pred_region
      %41 = dma.done [#allocation6], 512
    $region17: #{tpu_custom_call.1} parent=1 // pred_fallthru
      _
    %v42 = vld [vmem:[#allocation2] sm:$0xff]
    %v43 = vld [vmem:[#allocation5] sm:$0xff]
    %v44 = vld [vmem:[#allocation5 + $0x8] sm:$0xff]
    %v45 = vld [vmem:[#allocation5 + $0x10] sm:$0xff]
    %v46 = vld [vmem:[#allocation5 + $0x18] sm:$0xff]
    %vm47 = vcmask 261120
    %v49 = vsel %vm47, %v42, 0
    %51 = vmatpush.msra.mxu0 0.0
    %52 = vmatpush.msra.mxu0 0.0
    %53 = vmatpush.msra.mxu0 0.0
    %54 = vmatpush.msra.mxu0 0.0
    %55 = vmatpush.msra.mxu0 0.0
    %56 = vmatpush.msra.mxu0 0.0
    %57 = vmatpush.msra.mxu0 0.0
    %58 = vmatpush.msra.mxu0 0.0
    %59 = vmatpush.msra.mxu0 0.0
    %60 = vmatpush.msra.mxu0 0.0
    %61 = vmatpush.msra.mxu0 0.0
    %62 = vmatpush.msra.mxu0 0.0
    %63 = vmatpush.msra.mxu0 %v46
    %64 = vmatpush.msra.mxu0 %v45
    %65 = vmatpush.msra.mxu0 %v44
    %66 = vmatpush.msra.mxu0 %v43
    %67 = vmatmul.f32.gmra.mxu0 %v49
    %v68 = vpop.f32.mrf.mxu0
    %v69 = vadd.f32 0.0, %v68
    %70 = vdwg.mxu0
    %v71 = vmul.f32 %v69, 6.2831855
    %v72 = vand.u32 2147483647, %v71
    %vm73 = vcmp.le.f32.partialorder %v72, 0.7853982
    %vm74 = vcmp.lt.s32.totalorder %v71, 0
    %v75 = vand.u32 %v71, 2139095040
    %v76 = vshrl.u32 %v75, 23
    %v77 = vsub.s32 %v76, 127
    %v78 = vand.u32 2147483647, %v71
    %v79 = vand.u32 %v78, 8388607
    %v80 = vor.u32 %v79, 8388608
    %v81 = vsub.s32 0, %v80
    %v82 = vadd.s32 %v77, 1
    %vm83 = vcmp.gt.s32.totalorder %v82, 0
    %v84 = vsel %vm83, %v82, 0
    %v85 = vshrl.u32 %v84, 5
    %v86 = vand.u32 %v84, 31
    %v87 = vsub.s32 32, %v86
    %v88 = vshrl.u32 683565275, %v87
    %v89 = vshll.u32 683565275, %v86
    %v90 = vshrl.u32 2475754826, %v87
    %v91 = vor.u32 %v89, %v90
    %v92 = vshll.u32 2475754826, %v86
    %v93 = vshrl.u32 2131351028, %v87
    %v94 = vor.u32 %v92, %v93
    %v95 = vshll.u32 2131351028, %v86
    %v96 = vshrl.u32 2102212464, %v87
    %v97 = vor.u32 %v95, %v96
    %v98 = vshll.u32 2102212464, %v86
    %v99 = vshrl.u32 920167782, %v87
    %v100 = vor.u32 %v98, %v99
    %v101 = vshll.u32 920167782, %v86
    %v102 = vshrl.u32 1326507024, %v87
    %v103 = vor.u32 %v101, %v102
    %vm104 = vcmp.lt.s32.totalorder %v85, 1
    %vm105 = vcmp.lt.s32.totalorder %v85, 2
    %vm106 = vcmp.lt.s32.totalorder %v85, 3
    %vm107 = vcmp.lt.s32.totalorder %v85, 4
    %v108 = vsel %vm104, %v88, %v91
    %v109 = vsel %vm107, %v97, 2102212464
    %v110 = vsel %vm106, %v94, %v109
    %v111 = vsel %vm105, %v108, %v110
    %v112 = vsel %vm104, %v91, %v94
    %v113 = vsel %vm107, %v100, 920167782
    %v114 = vsel %vm106, %v97, %v113
    %v115 = vsel %vm105, %v112, %v114
    %v116 = vsel %vm104, %v94, %v97
    %v117 = vsel %vm107, %v103, 1326507024
    %v118 = vsel %vm106, %v100, %v117
    %v119 = vsel %vm105, %v116, %v118
    %v120 = vshll.u32 %v80, 8
    %v121 = vand.u32 %v120, 65535
    %v122 = vshrl.u32 %v120, 16
    %v123 = vand.u32 %v119, 65535
    %v124 = vshrl.u32 %v119, 16
    %v125 = vmul.u32 %v121, %v123
    %v126 = vmul.u32 %v121, %v124
    %v127 = vmul.u32 %v122, %v123
    %v128 = vmul.u32 %v122, %v124
    %v129 = vshll.u32 %v126, 16
    %v130 = vshrl.u32 %v126, 16
    %v131 = vshll.u32 %v127, 16
    %v132 = vshrl.u32 %v127, 16
    %vm133 = vc.u32 %v125, %v129
    %v134 = vsel %vm133, 1, 0
    %v135 = vadd.s32 %v125, %v129
    %v136 = vadd.s32 %v128, %v134
    %vm137 = vc.u32 %v135, %v131
    %v138 = vsel %vm137, 1, 0
    %v139 = vadd.s32 %v135, %v131
    %v140 = vadd.s32 %v136, %v138
    %v141 = vadd.s32 %v140, %v130
    %v142 = vadd.s32 %v141, %v132
    %v143 = vand.u32 %v120, 65535
    %v144 = vshrl.u32 %v120, 16
    %v145 = vand.u32 %v115, 65535
    %v146 = vshrl.u32 %v115, 16
    %v147 = vmul.u32 %v143, %v145
    %v148 = vmul.u32 %v143, %v146
    %v149 = vmul.u32 %v144, %v145
    %v150 = vmul.u32 %v144, %v146
    %v151 = vshll.u32 %v148, 16
    %v152 = vshrl.u32 %v148, 16
    %v153 = vshll.u32 %v149, 16
    %v154 = vshrl.u32 %v149, 16
    %vm155 = vc.u32 %v147, %v151
    %v156 = vsel %vm155, 1, 0
    %v157 = vadd.s32 %v147, %v151
    %v158 = vadd.s32 %v150, %v156
    %vm159 = vc.u32 %v157, %v153
    %v160 = vsel %vm159, 1, 0
    %v161 = vadd.s32 %v157, %v153
    %v162 = vadd.s32 %v158, %v160
    %v163 = vadd.s32 %v162, %v152
    %v164 = vadd.s32 %v163, %v154
    %v165 = vmul.u32 %v120, %v111
    %v166 = vadd.s32 %v142, %v161
    %vm167 = vc.u32 %v142, %v161
    %v168 = vadd.s32 %v164, 1
    %v169 = vsel %vm167, %v168, %v164
    %v170 = vadd.s32 %v165, %v169
    %v171 = vadd.s32 %v170, 536870912
    %v172 = vshrl.u32 %v171, 30
    %v173 = vshll.u32 %v172, 30
    %v174 = vsub.s32 %v170, %v173
    %vm175 = vcmp.lt.s32.totalorder %v174, 0
    %v176 = vsub.s32 0, %v174
    %v177 = vsel %vm175, %v176, %v174
    %v178 = vclz %v177
    %v179 = vsub.s32 %v178, 2
    %vm180 = vcmp.gt.s32.totalorder 0, %v179
    %v181 = vsel %vm180, 0, %v179
    %v182 = vsub.s32 32, %v181
    %v183 = vshll.u32 %v174, %v181
    %v184 = vshrl.u32 %v166, %v182
    %v185 = vor.u32 %v183, %v184
    %v186 = vsub.s32 4294967266, %v181
    %v187 = vadd.s32 %v186, 127
    %v188 = vshll.u32 %v187, 23
    %v189 = vor.u32 4788187, %v188
    %v190 = vand.u32 2147483647, %v189
    %v192 = vcvt.s32.f32 %v185
    %v193 = vmul.f32 %v192, %v190
    %v194 = vxor.u32 %v193, 2147483648
    %v195 = vsel %vm74, %v194, %v193
    %v196 = vsub.s32 4, %v172
    %v197 = vsel %vm74, %v196, %v172
    %v198 = vsel %vm73, %v71, %v195
    %v199 = vsel %vm73, 0, %v197
    %v200 = vmul.f32 %v198, %v198
    %v201 = vmul.f32 %v200, -0.001358992
    %v202 = vadd.f32 %v201, 0.041655596
    %v203 = vmul.f32 %v200, %v202
    %v204 = vadd.f32 %v203, -0.4999988
    %v205 = vmul.f32 %v200, %v204
    %v206 = vadd.f32 1.0, %v205
    %v207 = vmul.f32 %v198, %v198
    %v208 = vmul.f32 %v207, -0.00019511016
    %v209 = vadd.f32 %v208, 0.008332121
    %v210 = vmul.f32 %v207, %v209
    %v211 = vadd.f32 %v210, -0.16666654
    %v212 = vmul.f32 %v207, %v211
    %v213 = vadd.f32 %v212, 1.0
    %v214 = vmul.f32 %v213, %v198
    %vm215 = vweird.f32 %v71
    %v216 = vand.u32 %v199, 3
    %vm217 = vcmp.lt.s32.totalorder %v216, 2
    %vm218 = vcmp.eq.s32.totalorder %v216, 0
    %v219 = vxor.u32 %v214, 2147483648
    %v220 = vsel %vm218, %v206, %v219
    %vm221 = vcmp.eq.s32.totalorder %v216, 2
    %v222 = vxor.u32 %v206, 2147483648
    %v223 = vsel %vm221, %v222, %v214
    %v224 = vsel %vm217, %v220, %v223
    %v225 = vsel %vm215, nan, %v224
    %vm226 = vcmask 523264
    %227 = vst.msk [vmem:[#allocation7] sm:$0xff] %vm226, %v225
    %v228 = vand.u32 2147483647, %v71
    %vm229 = vcmp.le.f32.partialorder %v228, 0.7853982
    %vm230 = vcmp.lt.s32.totalorder %v71, 0
    %v231 = vand.u32 %v71, 2139095040
    %v232 = vshrl.u32 %v231, 23
    %v233 = vsub.s32 %v232, 127
    %v234 = vand.u32 2147483647, %v71
    %v235 = vand.u32 %v234, 8388607
    %v236 = vor.u32 %v235, 8388608
    %v237 = vsub.s32 0, %v236
    %v238 = vadd.s32 %v233, 1
    %vm239 = vcmp.gt.s32.totalorder %v238, 0
    %v240 = vsel %vm239, %v238, 0
    %v241 = vshrl.u32 %v240, 5
    %v242 = vand.u32 %v240, 31
    %v243 = vsub.s32 32, %v242
    %v244 = vshrl.u32 683565275, %v243
    %v245 = vshll.u32 683565275, %v242
    %v246 = vshrl.u32 2475754826, %v243
    %v247 = vor.u32 %v245, %v246
    %v248 = vshll.u32 2475754826, %v242
    %v249 = vshrl.u32 2131351028, %v243
    %v250 = vor.u32 %v248, %v249
    %v251 = vshll.u32 2131351028, %v242
    %v252 = vshrl.u32 2102212464, %v243
    %v253 = vor.u32 %v251, %v252
    %v254 = vshll.u32 2102212464, %v242
    %v255 = vshrl.u32 920167782, %v243
    %v256 = vor.u32 %v254, %v255
    %v257 = vshll.u32 920167782, %v242
    %v258 = vshrl.u32 1326507024, %v243
    %v259 = vor.u32 %v257, %v258
    %vm260 = vcmp.lt.s32.totalorder %v241, 1
    %vm261 = vcmp.lt.s32.totalorder %v241, 2
    %vm262 = vcmp.lt.s32.totalorder %v241, 3
    %vm263 = vcmp.lt.s32.totalorder %v241, 4
    %v264 = vsel %vm260, %v244, %v247
    %v265 = vsel %vm263, %v253, 2102212464
    %v266 = vsel %vm262, %v250, %v265
    %v267 = vsel %vm261, %v264, %v266
    %v268 = vsel %vm260, %v247, %v250
    %v269 = vsel %vm263, %v256, 920167782
    %v270 = vsel %vm262, %v253, %v269
    %v271 = vsel %vm261, %v268, %v270
    %v272 = vsel %vm260, %v250, %v253
    %v273 = vsel %vm263, %v259, 1326507024
    %v274 = vsel %vm262, %v256, %v273
    %v275 = vsel %vm261, %v272, %v274
    %v276 = vshll.u32 %v236, 8
    %v277 = vand.u32 %v276, 65535
    %v278 = vshrl.u32 %v276, 16
    %v279 = vand.u32 %v275, 65535
    %v280 = vshrl.u32 %v275, 16
    %v281 = vmul.u32 %v277, %v279
    %v282 = vmul.u32 %v277, %v280
    %v283 = vmul.u32 %v278, %v279
    %v284 = vmul.u32 %v278, %v280
    %v285 = vshll.u32 %v282, 16
    %v286 = vshrl.u32 %v282, 16
    %v287 = vshll.u32 %v283, 16
    %v288 = vshrl.u32 %v283, 16
    %vm289 = vc.u32 %v281, %v285
    %v290 = vsel %vm289, 1, 0
    %v291 = vadd.s32 %v281, %v285
    %v292 = vadd.s32 %v284, %v290
    %vm293 = vc.u32 %v291, %v287
    %v294 = vsel %vm293, 1, 0
    %v295 = vadd.s32 %v291, %v287
    %v296 = vadd.s32 %v292, %v294
    %v297 = vadd.s32 %v296, %v286
    %v298 = vadd.s32 %v297, %v288
    %v299 = vand.u32 %v276, 65535
    %v300 = vshrl.u32 %v276, 16
    %v301 = vand.u32 %v271, 65535
    %v302 = vshrl.u32 %v271, 16
    %v303 = vmul.u32 %v299, %v301
    %v304 = vmul.u32 %v299, %v302
    %v305 = vmul.u32 %v300, %v301
    %v306 = vmul.u32 %v300, %v302
    %v307 = vshll.u32 %v304, 16
    %v308 = vshrl.u32 %v304, 16
    %v309 = vshll.u32 %v305, 16
    %v310 = vshrl.u32 %v305, 16
    %vm311 = vc.u32 %v303, %v307
    %v312 = vsel %vm311, 1, 0
    %v313 = vadd.s32 %v303, %v307
    %v314 = vadd.s32 %v306, %v312
    %vm315 = vc.u32 %v313, %v309
    %v316 = vsel %vm315, 1, 0
    %v317 = vadd.s32 %v313, %v309
    %v318 = vadd.s32 %v314, %v316
    %v319 = vadd.s32 %v318, %v308
    %v320 = vadd.s32 %v319, %v310
    %v321 = vmul.u32 %v276, %v267
    %v322 = vadd.s32 %v298, %v317
    %vm323 = vc.u32 %v298, %v317
    %v324 = vadd.s32 %v320, 1
    %v325 = vsel %vm323, %v324, %v320
    %v326 = vadd.s32 %v321, %v325
    %v327 = vadd.s32 %v326, 536870912
    %v328 = vshrl.u32 %v327, 30
    %v329 = vshll.u32 %v328, 30
    %v330 = vsub.s32 %v326, %v329
    %vm331 = vcmp.lt.s32.totalorder %v330, 0
    %v332 = vsub.s32 0, %v330
    %v333 = vsel %vm331, %v332, %v330
    %v334 = vclz %v333
    %v335 = vsub.s32 %v334, 2
    %vm336 = vcmp.gt.s32.totalorder 0, %v335
    %v337 = vsel %vm336, 0, %v335
    %v338 = vsub.s32 32, %v337
    %v339 = vshll.u32 %v330, %v337
    %v340 = vshrl.u32 %v322, %v338
    %v341 = vor.u32 %v339, %v340
    %v342 = vsub.s32 4294967266, %v337
    %v343 = vadd.s32 %v342, 127
    %v344 = vshll.u32 %v343, 23
    %v345 = vor.u32 4788187, %v344
    %v346 = vand.u32 2147483647, %v345
    %v348 = vcvt.s32.f32 %v341
    %v349 = vmul.f32 %v348, %v346
    %v350 = vxor.u32 %v349, 2147483648
    %v351 = vsel %vm230, %v350, %v349
    %v352 = vsub.s32 4, %v328
    %v353 = vsel %vm230, %v352, %v328
    %v354 = vsel %vm229, %v71, %v351
    %v355 = vsel %vm229, 0, %v353
    %v356 = vmul.f32 %v354, %v354
    %v357 = vmul.f32 %v356, -0.001358992
    %v358 = vadd.f32 %v357, 0.041655596
    %v359 = vmul.f32 %v356, %v358
    %v360 = vadd.f32 %v359, -0.4999988
    %v361 = vmul.f32 %v356, %v360
    %v362 = vadd.f32 1.0, %v361
    %v363 = vmul.f32 %v354, %v354
    %v364 = vmul.f32 %v363, -0.00019511016
    %v365 = vadd.f32 %v364, 0.008332121
    %v366 = vmul.f32 %v363, %v365
    %v367 = vadd.f32 %v366, -0.16666654
    %v368 = vmul.f32 %v363, %v367
    %v369 = vadd.f32 %v368, 1.0
    %v370 = vmul.f32 %v369, %v354
    %vm371 = vweird.f32 %v71
    %v372 = vadd.s32 %v355, 3
    %v373 = vand.u32 %v372, 3
    %vm374 = vcmp.lt.s32.totalorder %v373, 2
    %vm375 = vcmp.eq.s32.totalorder %v373, 0
    %v376 = vxor.u32 %v370, 2147483648
    %v377 = vsel %vm375, %v362, %v376
    %vm378 = vcmp.eq.s32.totalorder %v373, 2
    %v379 = vxor.u32 %v362, 2147483648
    %v380 = vsel %vm378, %v379, %v370
    %v381 = vsel %vm374, %v377, %v380
    %v382 = vsel %vm371, nan, %v381
    %384 = vrot.lane.b32.xlu0 %v382, 64
    %v385 = vpop.permute.xlu0 %384
    %vm387 = vcmask 1048064
    %388 = vst.msk [vmem:[#allocation7] sm:$0xff] %vm387, %v385
    // Predicated region
    $region18: #{tpu_custom_call.1} parent=1 // pred_check
      _
    $region19: #{tpu_custom_call.1} parent=1 // pred_check_branch
      %390 = sbr.rel (0) target = $region21
    $region20: #{tpu_custom_call.1} parent=1 // pred_region
      %392 = vsyncadd [#allocation4], 0
      %s394 = sshll.u32 [#allocation7], 4
      %s395 = int_to_ptr.vmem [resolvable:$true] %s394
      %s396 = sshll.u32 %s2, 4
      %s397 = int_to_ptr.hbm [resolvable:$true] %s396
      %399 = dma.vmem_to_hbm [thread:$0]  %s395, 128, %s397, [#allocation4]
    $region21: #{tpu_custom_call.1} parent=1 // pred_fallthru
      _
    // Predicated region
    $region22: #{tpu_custom_call.1} parent=1 // pred_check
      _
    $region23: #{tpu_custom_call.1} parent=1 // pred_check_branch
      %401 = sbr.rel (0) target = $region25
    $region24: #{tpu_custom_call.1} parent=1 // pred_region
      %403 = dma.done [#allocation4], 128
    $region25: #{tpu_custom_call.1} parent=1 // pred_fallthru
      _
    %404 = vsyncpa [#allocation3], 1
    %405 = vsyncpa [#allocation6], 1
    %406 = vsyncpa [#allocation4], 1

</llo_original>
